<compile_context>
chip_gen: v5e
topology: v5e:2x2
jax: 0.10.0
libtpu: 0.0.40
codegen_flags: <defaults>
</compile_context>

<pallas_src>
import jax
import jax.numpy as jnp
from jax import lax
from jax.experimental import pallas as pl
from jax.experimental.pallas import tpu as pltpu


# ----------------------------------------------------------------------------
# Core: weighted mean cross-entropy over class-major logits [C, M]
# ----------------------------------------------------------------------------

def weighted_cross_entropy_cm(pred_cm, target, weight, *, block_cols=32768):
    """pred_cm: [C, M] logits (class-major), target: [M] int ids, weight: [C].

    Returns scalar mean weighted cross-entropy (PyTorch F.cross_entropy with
    per-class `weight`, reduction='mean').  If all rows are masked the result
    is 0/0 = NaN, matching PyTorch's empty weighted mean."""
    C, M = pred_cm.shape

    # Column (point) tile: multiple of 128, as large as sensible, never larger
    # than the data needs.  Real bytes per step: C * tN * 4 (~0.64 MiB at 32768).
    tN = min(block_cols, max(128, (M // 128) * 128))
    T = pl.cdiv(M, tN)              # number of column tiles
    ncores = 2 if T >= 2 else 1     # megacore split (2x on v7x, no-op on 1-TC chips)
    T2 = pl.cdiv(T, ncores)         # tiles per core

    tgt2 = target.reshape(1, M).astype(jnp.int32)      # lane-dense targets
    w2 = weight.reshape(C, 1).astype(jnp.float32)      # class weights, one per sublane

    def kernel(pred_ref, tgt_ref, w_ref, nll_ref, wsum_ref, nll_acc, wsum_acc):
        t = pl.program_id(1)                 # reduction (tile) axis
        n_t = pl.num_programs(1)

        @pl.when(t == 0)
        def _():
            nll_acc[...] = jnp.zeros_like(nll_acc)
            wsum_acc[...] = jnp.zeros_like(wsum_acc)

        x = pred_ref[...].astype(jnp.float32)           # [C, tN] logits
        tgt = tgt_ref[...]                              # [1, tN] int32
        w = w_ref[...].astype(jnp.float32)              # [C, 1]

        # Validity mask from the *unclamped* logical tile index (handles both the
        # ragged tail and the fully-masked overhang tile of the megacore split).
        tile = pl.program_id(0) * n_t + t
        col = tile * tN + lax.broadcasted_iota(jnp.int32, (1, tN), 1)
        valid = col < M                                 # [1, tN] bool

        # Target one-hot over the (sublane) class axis.
        cls = lax.broadcasted_iota(jnp.int32, (C, tN), 0)
        onehot = (cls == tgt).astype(jnp.float32)       # [C, tN]

        # Numerically-stable log-sum-exp over classes (sublane reduces).
        m = jnp.max(x, axis=0, keepdims=True)                                # [1, tN]
        lse = jnp.log(jnp.sum(jnp.exp(x - m), axis=0, keepdims=True)) + m    # [1, tN]

        picked = jnp.sum(onehot * x, axis=0, keepdims=True)   # logit of target class
        w_row = jnp.sum(onehot * w, axis=0, keepdims=True)    # weight[target]

        # Mask with where (not by zero weight) so garbage tail logits can't
        # inject NaN/inf into the accumulators.
        nll_acc[...] += jnp.where(valid, w_row * (lse - picked), 0.0)
        wsum_acc[...] += jnp.where(valid, w_row, 0.0)

        @pl.when(t == n_t - 1)
        def _():
            s_nll = jnp.sum(nll_acc[...], axis=1, keepdims=True)    # (1, 1)
            s_w = jnp.sum(wsum_acc[...], axis=1, keepdims=True)
            nll_ref[...] = jnp.broadcast_to(s_nll, nll_ref.shape)
            wsum_ref[...] = jnp.broadcast_to(s_w, wsum_ref.shape)

    def col_map(p, t):
        # Clamp so the DMA never targets a block index past the array; the
        # in-kernel mask (computed from the unclamped index) zeroes such tiles.
        return (0, jnp.minimum(p * T2 + t, T - 1))

    nll_out, wsum_out = pl.pallas_call(
        kernel,
        out_shape=(jax.ShapeDtypeStruct((8, ncores * 128), jnp.float32),
                   jax.ShapeDtypeStruct((8, ncores * 128), jnp.float32)),
        grid=(ncores, T2),
        in_specs=[
            pl.BlockSpec((C, tN), col_map),             # logits tile (lane-dense)
            pl.BlockSpec((1, tN), col_map),             # targets tile (lane-dense)
            pl.BlockSpec((C, 1), lambda p, t: (0, 0)),  # class weights (resident)
        ],
        out_specs=[
            pl.BlockSpec((8, 128), lambda p, t: (0, p)),  # per-core weighted-NLL sum
            pl.BlockSpec((8, 128), lambda p, t: (0, p)),  # per-core weight sum
        ],
        scratch_shapes=[pltpu.VMEM((1, tN), jnp.float32),   # per-lane NLL partials
                        pltpu.VMEM((1, tN), jnp.float32)],  # per-lane weight partials
        compiler_params=pltpu.CompilerParams(
            dimension_semantics=("parallel", "arbitrary")),
    )(pred_cm, tgt2, w2)

    # Each core's block is filled with its scalar partial; pick one element per
    # core and combine the (at most 2) partials in plain JAX.
    nll = nll_out.reshape(8, ncores, 128)[0, :, 0].sum()
    wsum = wsum_out.reshape(8, ncores, 128)[0, :, 0].sum()
    return nll / wsum


# ----------------------------------------------------------------------------
# Module-equivalent wrapper: get_loss.forward(pred, target, trans_feat, weight)
# ----------------------------------------------------------------------------

def get_loss_forward(pred, target, trans_feat, weight):
    """Matches PyTorch get_loss.forward: F.cross_entropy(pred, target, weight)."""
    del trans_feat  # unused by the reference module
    if pred.ndim == 2:
        # Training-loop layout [M, C]: one transpose to the class-major layout
        # the lane-dense kernel consumes.
        # TODO(synk): callers that still hold the native [B, C, N] network output
        # should pass it directly (branch below) and skip this transpose copy.
        pred_cm = pred.T
        target_flat = target.reshape(-1)
    else:
        # F.cross_entropy layout [B, C, d1, ...]: single permute to [C, B*prod(d)].
        B, C = pred.shape[0], pred.shape[1]
        pred_cm = jnp.transpose(pred.reshape(B, C, -1), (1, 0, 2)).reshape(C, -1)
        target_flat = target.reshape(-1)
    return weighted_cross_entropy_cm(pred_cm, target_flat, weight)


# ----------------------------------------------------------------------------
if __name__ == "__main__":
    key = jax.random.PRNGKey(0)
    k1, k2, k3 = jax.random.split(key, 3)

    # Small shapes consistent with the sem-seg training loop: pred is
    # [B*N, num_classes] logits, target is [B*N].  M=1000 deliberately exercises
    # the ragged-tail masking and (on v7x) the 2-core split.
    B, N, num_classes = 2, 500, 5
    M = B * N
    pred = jax.random.normal(k1, (M, num_classes), jnp.float32)
    target = jax.random.randint(k2, (M,), 0, num_classes, dtype=jnp.int32)
    weight = 0.5 + jax.random.uniform(k3, (num_classes,), jnp.float32)
    trans_feat = jnp.zeros((B, 16, 16), jnp.float32)  # unused by the loss

    loss = jax.jit(get_loss_forward)(pred, target, trans_feat, weight)
    loss = jax.block_until_ready(loss)

    # Pure-JAX reference (same math as F.cross_entropy with class weights).
    logp = jax.nn.log_softmax(pred, axis=-1)
    picked = jnp.take_along_axis(logp, target[:, None], axis=-1)[:, 0]
    w_i = weight[target]
    ref = -jnp.sum(w_i * picked) / jnp.sum(w_i)

    assert loss.shape == (), loss.shape
    assert jnp.allclose(loss, ref, rtol=1e-4, atol=1e-5), (float(loss), float(ref))
    print("KERNEL_OK")
</pallas_src>

<mosaic_0001>
module attributes {stable_mosaic.version = 11 : i64} {
  func.func @kernel(%arg0: i32, %arg1: i32, %arg2: memref<5x896xf32, #tpu.memory_space<vmem>>, %arg3: memref<1x896xi32, #tpu.memory_space<vmem>>, %arg4: memref<5x1xf32, #tpu.memory_space<vmem>>, %arg5: memref<8x128xf32, #tpu.memory_space<vmem>>, %arg6: memref<8x128xf32, #tpu.memory_space<vmem>>, %arg7: memref<1x896xf32, #tpu.memory_space<vmem>>, %arg8: memref<1x896xf32, #tpu.memory_space<vmem>>) attributes {dimension_semantics = [#tpu.dimension_semantics<parallel>, #tpu.dimension_semantics<arbitrary>], iteration_bounds = array<i64: 2, 1>, scalar_prefetch = 0 : i64, scratch_operands = 2 : i64, tpu.core_type = #tpu.core_type<tc>, window_params = [{transform_indices = @transform_0, window_bounds = array<i64: 5, 896>}, {transform_indices = @transform_1, window_bounds = array<i64: 1, 896>}, {pipeline_mode = #tpu.pipeline_mode<synchronous>, transform_indices = @transform_2, window_bounds = array<i64: 5, 1>}, {transform_indices = @transform_3, window_bounds = array<i64: 8, 128>}, {transform_indices = @transform_4, window_bounds = array<i64: 8, 128>}]} {
    %c0_i32 = arith.constant 0 : i32
    %0 = arith.cmpi eq, %arg1, %c0_i32 : i32
    %1 = arith.extui %0 : i1 to i32
    %c0_i32_0 = arith.constant 0 : i32
    %2 = arith.cmpi ne, %1, %c0_i32_0 : i32
    scf.if %2 {
      %cst_21 = arith.constant 0.000000e+00 : f32
      %50 = vector.broadcast %cst_21 : f32 to vector<1x896xf32>
      %c0_22 = arith.constant 0 : index
      %c0_23 = arith.constant 0 : index
      %51 = vector.load %arg7[%c0_22, %c0_23] : memref<1x896xf32, #tpu.memory_space<vmem>>, vector<1x896xf32>
      tpu.vector_store %arg7[%c0_22, %c0_23], %50 {strides = array<i32>} : memref<1x896xf32, #tpu.memory_space<vmem>>, vector<1x896xf32>,
      %cst_24 = arith.constant 0.000000e+00 : f32
      %52 = vector.broadcast %cst_24 : f32 to vector<1x896xf32>
      %c0_25 = arith.constant 0 : index
      %c0_26 = arith.constant 0 : index
      %53 = vector.load %arg8[%c0_25, %c0_26] : memref<1x896xf32, #tpu.memory_space<vmem>>, vector<1x896xf32>
      tpu.vector_store %arg8[%c0_25, %c0_26], %52 {strides = array<i32>} : memref<1x896xf32, #tpu.memory_space<vmem>>, vector<1x896xf32>,
    } else {
    }
    %c0 = arith.constant 0 : index
    %c0_1 = arith.constant 0 : index
    %3 = vector.load %arg2[%c0, %c0_1] : memref<5x896xf32, #tpu.memory_space<vmem>>, vector<5x896xf32>
    %c0_2 = arith.constant 0 : index
    %c0_3 = arith.constant 0 : index
    %4 = vector.load %arg3[%c0_2, %c0_3] : memref<1x896xi32, #tpu.memory_space<vmem>>, vector<1x896xi32>
    %c0_4 = arith.constant 0 : index
    %c0_5 = arith.constant 0 : index
    %5 = vector.load %arg4[%c0_4, %c0_5] : memref<5x1xf32, #tpu.memory_space<vmem>>, vector<5x1xf32>
    %c1_i32 = arith.constant 1 : i32
    %6 = arith.muli %arg0, %c1_i32 : i32
    %7 = arith.addi %6, %arg1 : i32
    %c896_i32 = arith.constant 896 : i32
    %8 = arith.muli %7, %c896_i32 : i32
    %9 = tpu.iota {dimensions = array<i32: 1>} : vector<1x896xi32>
    %10 = vector.broadcast %8 : i32 to vector<1x896xi32>
    %11 = arith.addi %10, %9 : vector<1x896xi32>
    %c1000_i32 = arith.constant 1000 : i32
    %12 = vector.broadcast %c1000_i32 : i32 to vector<1x896xi32>
    %13 = arith.cmpi slt, %11, %12 : vector<1x896xi32>
    %14 = tpu.iota {dimensions = array<i32: 0>} : vector<5x896xi32>
    %15 = vector.broadcast %4 : vector<1x896xi32> to vector<5x896xi32>
    %16 = arith.cmpi eq, %14, %15 : vector<5x896xi32>
    %17 = arith.extui %16 : vector<5x896xi1> to vector<5x896xi32>
    %18 = arith.sitofp %17 : vector<5x896xi32> to vector<5x896xf32>
    %cst = arith.constant dense<0xFF800000> : vector<896xf32>
    %19 = vector.multi_reduction <maximumf>, %3, %cst [0] : vector<5x896xf32> to vector<896xf32>
    %20 = vector.shape_cast %19 : vector<896xf32> to vector<1x896xf32>
    %21 = vector.broadcast %20 : vector<1x896xf32> to vector<5x896xf32>
    %22 = arith.subf %3, %21 : vector<5x896xf32>
    %23 = math.exp %22 : vector<5x896xf32>
    %cst_6 = arith.constant dense<0.000000e+00> : vector<896xf32>
    %24 = vector.multi_reduction <add>, %23, %cst_6 [0] : vector<5x896xf32> to vector<896xf32>
    %25 = vector.shape_cast %24 : vector<896xf32> to vector<1x896xf32>
    %26 = math.log %25 : vector<1x896xf32>
    %27 = arith.addf %26, %20 : vector<1x896xf32>
    %28 = arith.mulf %18, %3 : vector<5x896xf32>
    %cst_7 = arith.constant dense<0.000000e+00> : vector<896xf32>
    %29 = vector.multi_reduction <add>, %28, %cst_7 [0] : vector<5x896xf32> to vector<896xf32>
    %30 = vector.shape_cast %29 : vector<896xf32> to vector<1x896xf32>
    %31 = vector.broadcast %5 : vector<5x1xf32> to vector<5x896xf32>
    %32 = arith.mulf %18, %31 : vector<5x896xf32>
    %cst_8 = arith.constant dense<0.000000e+00> : vector<896xf32>
    %33 = vector.multi_reduction <add>, %32, %cst_8 [0] : vector<5x896xf32> to vector<896xf32>
    %34 = vector.shape_cast %33 : vector<896xf32> to vector<1x896xf32>
    %c0_9 = arith.constant 0 : index
    %c0_10 = arith.constant 0 : index
    %35 = vector.load %arg7[%c0_9, %c0_10] : memref<1x896xf32, #tpu.memory_space<vmem>>, vector<1x896xf32>
    %36 = arith.subf %27, %30 : vector<1x896xf32>
    %37 = arith.mulf %34, %36 : vector<1x896xf32>
    %cst_11 = arith.constant 0.000000e+00 : f32
    %38 = vector.broadcast %cst_11 : f32 to vector<1x896xf32>
    %39 = arith.select %13, %37, %38 : vector<1x896xi1>, vector<1x896xf32>
    %40 = arith.addf %35, %39 : vector<1x896xf32>
    %c0_12 = arith.constant 0 : index
    %c0_13 = arith.constant 0 : index
    %41 = vector.load %arg7[%c0_12, %c0_13] : memref<1x896xf32, #tpu.memory_space<vmem>>, vector<1x896xf32>
    tpu.vector_store %arg7[%c0_12, %c0_13], %40 {strides = array<i32>} : memref<1x896xf32, #tpu.memory_space<vmem>>, vector<1x896xf32>,
    %c0_14 = arith.constant 0 : index
    %c0_15 = arith.constant 0 : index
    %42 = vector.load %arg8[%c0_14, %c0_15] : memref<1x896xf32, #tpu.memory_space<vmem>>, vector<1x896xf32>
    %cst_16 = arith.constant 0.000000e+00 : f32
    %43 = vector.broadcast %cst_16 : f32 to vector<1x896xf32>
    %44 = arith.select %13, %34, %43 : vector<1x896xi1>, vector<1x896xf32>
    %45 = arith.addf %42, %44 : vector<1x896xf32>
    %c0_17 = arith.constant 0 : index
    %c0_18 = arith.constant 0 : index
    %46 = vector.load %arg8[%c0_17, %c0_18] : memref<1x896xf32, #tpu.memory_space<vmem>>, vector<1x896xf32>
    tpu.vector_store %arg8[%c0_17, %c0_18], %45 {strides = array<i32>} : memref<1x896xf32, #tpu.memory_space<vmem>>, vector<1x896xf32>,
    %c0_i32_19 = arith.constant 0 : i32
    %47 = arith.cmpi eq, %arg1, %c0_i32_19 : i32
    %48 = arith.extui %47 : i1 to i32
    %c0_i32_20 = arith.constant 0 : i32
    %49 = arith.cmpi ne, %48, %c0_i32_20 : i32
    scf.if %49 {
      %c0_21 = arith.constant 0 : index
      %c0_22 = arith.constant 0 : index
      %50 = vector.load %arg7[%c0_21, %c0_22] : memref<1x896xf32, #tpu.memory_space<vmem>>, vector<1x896xf32>
      %cst_23 = arith.constant dense<0.000000e+00> : vector<1xf32>
      %51 = vector.multi_reduction <add>, %50, %cst_23 [1] : vector<1x896xf32> to vector<1xf32>
      %52 = vector.shape_cast %51 : vector<1xf32> to vector<1x1xf32>
      %c0_24 = arith.constant 0 : index
      %c0_25 = arith.constant 0 : index
      %53 = vector.load %arg8[%c0_24, %c0_25] : memref<1x896xf32, #tpu.memory_space<vmem>>, vector<1x896xf32>
      %cst_26 = arith.constant dense<0.000000e+00> : vector<1xf32>
      %54 = vector.multi_reduction <add>, %53, %cst_26 [1] : vector<1x896xf32> to vector<1xf32>
      %55 = vector.shape_cast %54 : vector<1xf32> to vector<1x1xf32>
      %56 = vector.shape_cast %52 : vector<1x1xf32> to vector<1x1xf32>
      %57 = vector.broadcast %56 : vector<1x1xf32> to vector<8x128xf32>
      %c0_27 = arith.constant 0 : index
      %c0_28 = arith.constant 0 : index
      %58 = vector.load %arg5[%c0_27, %c0_28] : memref<8x128xf32, #tpu.memory_space<vmem>>, vector<8x128xf32>
      tpu.vector_store %arg5[%c0_27, %c0_28], %57 {strides = array<i32>} : memref<8x128xf32, #tpu.memory_space<vmem>>, vector<8x128xf32>,
      %59 = vector.shape_cast %55 : vector<1x1xf32> to vector<1x1xf32>
      %60 = vector.broadcast %59 : vector<1x1xf32> to vector<8x128xf32>
      %c0_29 = arith.constant 0 : index
      %c0_30 = arith.constant 0 : index
      %61 = vector.load %arg6[%c0_29, %c0_30] : memref<8x128xf32, #tpu.memory_space<vmem>>, vector<8x128xf32>
      tpu.vector_store %arg6[%c0_29, %c0_30], %60 {strides = array<i32>} : memref<8x128xf32, #tpu.memory_space<vmem>>, vector<8x128xf32>,
    } else {
    }
    return
  }
  func.func @transform_0(%arg0: i32, %arg1: i32) -> (i32, i32) {
    %c1_i32 = arith.constant 1 : i32
    %0 = arith.muli %arg0, %c1_i32 : i32
    %1 = arith.addi %0, %arg1 : i32
    %c1_i32_0 = arith.constant 1 : i32
    %2 = arith.minsi %1, %c1_i32_0 : i32
    %c0_i32 = arith.constant 0 : i32
    %c0_i32_1 = arith.constant 0 : i32
    return %c0_i32, %2 : i32, i32
  }
  func.func @transform_1(%arg0: i32, %arg1: i32) -> (i32, i32) {
    %c1_i32 = arith.constant 1 : i32
    %0 = arith.muli %arg0, %c1_i32 : i32
    %1 = arith.addi %0, %arg1 : i32
    %c1_i32_0 = arith.constant 1 : i32
    %2 = arith.minsi %1, %c1_i32_0 : i32
    %c0_i32 = arith.constant 0 : i32
    %c0_i32_1 = arith.constant 0 : i32
    return %c0_i32, %2 : i32, i32
  }
  func.func @transform_2(%arg0: i32, %arg1: i32) -> (i32, i32) {
    %c0_i32 = arith.constant 0 : i32
    %c0_i32_0 = arith.constant 0 : i32
    %c0_i32_1 = arith.constant 0 : i32
    return %c0_i32, %c0_i32_0 : i32, i32
  }
  func.func @transform_3(%arg0: i32, %arg1: i32) -> (i32, i32) {
    %c0_i32 = arith.constant 0 : i32
    %c0_i32_0 = arith.constant 0 : i32
    return %c0_i32, %arg0 : i32, i32
  }
  func.func @transform_4(%arg0: i32, %arg1: i32) -> (i32, i32) {
    %c0_i32 = arith.constant 0 : i32
    %c0_i32_0 = arith.constant 0 : i32
    return %c0_i32, %arg0 : i32, i32
  }
}

</mosaic_0001>

<llo_original>
// kernel: get_loss_forward.1
$region0: #{get_loss_forward.1}
  #allocation0 [shape = 'u32[]', space=smem, size = 0x4, offset = 0x4, fixed_abs, tag = 'smem constant byte address 0x4 - core index']
  #allocation1 [shape = 'u32[72,128]{1,0:T(1,128)}', space=vmem, size = 0x9000, scoped, tag = 'internal scratch']
  #allocation2 [shape = 'f32[1,896]{1,0:T(1,128)}', space=vmem, size = 0xe00, scoped, tag = 'scratch operand']
  #allocation3 [shape = 'f32[1,896]{1,0:T(1,128)}', space=vmem, size = 0xe00, scoped, tag = 'scratch operand']
  %s0 = inlined_call_operand.hbm [shape: f32[5,1000], index: 0, kind: input, shape index: {}]
  %s1 = inlined_call_operand.vmem [shape: s32[1,1000], index: 1, kind: input, shape index: {}]
  %s2 = inlined_call_operand.vmem [shape: f32[5,1], index: 2, kind: input, shape index: {}]
  %s3 = inlined_call_operand.vmem [shape: f32[8,256], index: 3, kind: output, shape index: {0}]
  %s4 = inlined_call_operand.vmem [shape: f32[8,256], index: 4, kind: output, shape index: {1}]
  %5 = xla_tuple %s3, %s4
  %s6 = sld [smem:[#allocation0]]
  $region65: #{get_loss_forward.1} parent=0
    _
  %s8 = ssub.s32 1, %s6
  %s9 = scalar_select 0, %s8, %s6
  $region1: #{get_loss_forward.1} parent=0
    #allocation4 [shape = 'u8[57344]{0}', space=vmem, size = 0xe000, scoped, tag = 'input window, operand 0']
    #allocation5 [shape = 's32[2]{0}', space=sflag, size = 0x8, scoped, tag = 'scoped memory for get_loss_forward.1']
    %10 = vsyncpa [#allocation5], 0
    %s11 = scalar_lea.sflag [#allocation5], 1
    %12 = vsyncpa %s11, 0
    loop: start=0, step=1, limit=4
    $region2: #{get_loss_forward.1} parent=1 // loop_pre_header
      _
    $region3: #{get_loss_forward.1} parent=1 // loop_header
      %s14 = sphi 0, %s18
      %p15 = scmp.ge.s32.totalorder %s14, 4
      %s21 = sphi 0, %s33
      %s22 = sphi 0, %s29
      %s23 = sphi 0, %s21
      %s24 = sphi 0, %s22
      %s25 = sphi 0, %s23
      %s26 = sphi 0, %s24
      %s42 = sphi 0, %s44
      %s45 = sphi 0, %s42
      %s46 = sphi 0, %s45
      %s62 = sphi 0, %s46
      %s74 = sphi 0, %s76
      %s77 = sphi 0, %s74
      %s78 = sphi 0, %s77
      %s94 = sphi 0, %s78
      %s98 = sphi 0, %s98
      %s100 = sphi 0, %s98
      %s101 = sphi 0, %s100
      %s115 = sphi 0, %s101
      %s121 = sphi 0, %s123
      %s124 = sphi 0, %s121
      %s125 = sphi 0, %s124
      %s141 = sphi 0, %s125
      %s147 = sphi 0, %s149
      %s150 = sphi 0, %s147
      %s151 = sphi 0, %s150
      %s167 = sphi 0, %s151
    $region4: #{get_loss_forward.1} parent=1 // loop_header_branch
      %17 = sbr.rel (%p15) target = $region8
    $region5: #{get_loss_forward.1} parent=1 // loop_body
      %s19 = ssub.s32 %s14, 1
      %s20 = ssub.s32 %s14, 2
      %s27 = sadd.s32 1, %s22
      %p28 = scmp.ge.s32.totalorder %s27, 1
      %s29 = scalar_select %p28, 0, %s27
      %s30 = sadd.s32 1, %s21
      %s31 = scalar_select %p28, %s30, %s21
      %p32 = scmp.ge.s32.totalorder %s31, 2
      %s33 = scalar_select %p32, 0, %s31
      %s34 = sadd.s32 %s21, %s22
      %p35 = scmp.lt.s32.totalorder %s34, 1
      %s36 = scalar_select %p35, %s34, 1
      %s37 = sadd.s32 %s33, %s29
      %p38 = scmp.lt.s32.totalorder %s37, 1
      %s39 = scalar_select %p38, %s37, 1
      %s40 = ssub.s32 %s36, %s39
      %p41 = scmp.eq.s32.totalorder %s40, 0
      %s43 = sadd.s32 %s42, 1
      %s44 = scalar_select %p41, %s42, %s43
      %p47 = pneg %p41
      %p48 = scmp.eq.s32.totalorder %s14, 1
      %p49 = por %p47, %p48
      %p50 = scmp.ne.s32.totalorder %s42, %s45
      %p51 = scmp.eq.s32.totalorder %s14, 0
      %p52 = por %p50, %p51
      %p53 = scmp.ne.s32.totalorder %s42, %s45
      %p54 = scmp.eq.s32.totalorder %s19, 1
      %p55 = por %p53, %p54
      %p56 = scmp.ne.s32.totalorder %s45, %s46
      %p57 = scmp.eq.s32.totalorder %s19, 0
      %p58 = por %p56, %p57
      %p59 = scmp.ne.s32.totalorder %s45, %s46
      %p60 = scmp.eq.s32.totalorder %s20, 1
      %p61 = por %p59, %p60
      %p63 = scmp.ne.s32.totalorder %s46, %s62
      %p64 = scmp.eq.s32.totalorder %s20, 0
      %p65 = por %p63, %p64
      %s66 = sadd.s32 %s21, %s22
      %p67 = scmp.lt.s32.totalorder %s66, 1
      %s68 = scalar_select %p67, %s66, 1
      %s69 = sadd.s32 %s33, %s29
      %p70 = scmp.lt.s32.totalorder %s69, 1
      %s71 = scalar_select %p70, %s69, 1
      %s72 = ssub.s32 %s68, %s71
      %p73 = scmp.eq.s32.totalorder %s72, 0
      %s75 = sadd.s32 %s74, 1
      %s76 = scalar_select %p73, %s74, %s75
      %p79 = pneg %p73
      %p80 = scmp.eq.s32.totalorder %s14, 1
      %p81 = por %p79, %p80
      %p82 = scmp.ne.s32.totalorder %s74, %s77
      %p83 = scmp.eq.s32.totalorder %s14, 0
      %p84 = por %p82, %p83
      %p85 = scmp.ne.s32.totalorder %s74, %s77
      %p86 = scmp.eq.s32.totalorder %s19, 1
      %p87 = por %p85, %p86
      %p88 = scmp.ne.s32.totalorder %s77, %s78
      %p89 = scmp.eq.s32.totalorder %s19, 0
      %p90 = por %p88, %p89
      %p91 = scmp.ne.s32.totalorder %s77, %s78
      %p92 = scmp.eq.s32.totalorder %s20, 1
      %p93 = por %p91, %p92
      %p95 = scmp.ne.s32.totalorder %s78, %s94
      %p96 = scmp.eq.s32.totalorder %s20, 0
      %p97 = por %p95, %p96
      %s99 = sadd.s32 %s98, 1
      %p102 = scmp.eq.s32.totalorder %s14, 1
      %p103 = scmp.ne.s32.totalorder %s98, %s100
      %p104 = scmp.eq.s32.totalorder %s14, 0
      %p105 = por %p103, %p104
      %p106 = scmp.ne.s32.totalorder %s98, %s100
      %p107 = scmp.eq.s32.totalorder %s19, 1
      %p108 = por %p106, %p107
      %p109 = scmp.ne.s32.totalorder %s100, %s101
      %p110 = scmp.eq.s32.totalorder %s19, 0
      %p111 = por %p109, %p110
      %p112 = scmp.ne.s32.totalorder %s100, %s101
      %p113 = scmp.eq.s32.totalorder %s20, 1
      %p114 = por %p112, %p113
      %p116 = scmp.ne.s32.totalorder %s101, %s115
      %p117 = scmp.eq.s32.totalorder %s20, 0
      %p118 = por %p116, %p117
      %s119 = ssub.s32 %s21, %s33
      %p120 = scmp.eq.s32.totalorder %s119, 0
      %s122 = sadd.s32 %s121, 1
      %s123 = scalar_select %p120, %s121, %s122
      %p126 = pneg %p120
      %p127 = scmp.eq.s32.totalorder %s14, 1
      %p128 = por %p126, %p127
      %p129 = scmp.ne.s32.totalorder %s121, %s124
      %p130 = scmp.eq.s32.totalorder %s14, 0
      %p131 = por %p129, %p130
      %p132 = scmp.ne.s32.totalorder %s121, %s124
      %p133 = scmp.eq.s32.totalorder %s19, 1
      %p134 = por %p132, %p133
      %p135 = scmp.ne.s32.totalorder %s124, %s125
      %p136 = scmp.eq.s32.totalorder %s19, 0
      %p137 = por %p135, %p136
      %p138 = scmp.ne.s32.totalorder %s124, %s125
      %p139 = scmp.eq.s32.totalorder %s20, 1
      %p140 = por %p138, %p139
      %p142 = scmp.ne.s32.totalorder %s125, %s141
      %p143 = scmp.eq.s32.totalorder %s20, 0
      %p144 = por %p142, %p143
      %s145 = ssub.s32 %s21, %s33
      %p146 = scmp.eq.s32.totalorder %s145, 0
      %s148 = sadd.s32 %s147, 1
      %s149 = scalar_select %p146, %s147, %s148
      %p152 = pneg %p146
      %p153 = scmp.eq.s32.totalorder %s14, 1
      %p154 = por %p152, %p153
      %p155 = scmp.ne.s32.totalorder %s147, %s150
      %p156 = scmp.eq.s32.totalorder %s14, 0
      %p157 = por %p155, %p156
      %p158 = scmp.ne.s32.totalorder %s147, %s150
      %p159 = scmp.eq.s32.totalorder %s19, 1
      %p160 = por %p158, %p159
      %p161 = scmp.ne.s32.totalorder %s150, %s151
      %p162 = scmp.eq.s32.totalorder %s19, 0
      %p163 = por %p161, %p162
      %p164 = scmp.ne.s32.totalorder %s150, %s151
      %p165 = scmp.eq.s32.totalorder %s20, 1
      %p166 = por %p164, %p165
      %p168 = scmp.ne.s32.totalorder %s151, %s167
      %p169 = scmp.eq.s32.totalorder %s20, 0
      %p170 = por %p168, %p169
      %p171 = scmp.le.s32.totalorder 1, %s14
      %p172 = scmp.lt.s32.totalorder %s14, 3
      %p173 = pnand %p171, %p172
      %p174 = pneg %p173
      // Predicated region
      $region9: #{get_loss_forward.1} parent=5 // pred_check
        _
      $region10: #{get_loss_forward.1} parent=5 // pred_check_branch
        %176 = sbr.rel (%p173) target = $region12
      $region11: #{get_loss_forward.1} parent=5 // pred_region
        %s177 = ssub.s32 %s14, 1
        // Predicated region
        $region13: #{get_loss_forward.1} parent=11 // pred_check
          %p178 = pneg %p111
        $region14: #{get_loss_forward.1} parent=11 // pred_check_branch
          %180 = sbr.rel (%p178) target = $region16
        $region15: #{get_loss_forward.1} parent=11 // pred_region
          _
        $region16: #{get_loss_forward.1} parent=11 // pred_fallthru
          _
      $region12: #{get_loss_forward.1} parent=5 // pred_fallthru
        _
      %p181 = scmp.lt.s32.totalorder %s14, 2
      // Predicated region
      $region17: #{get_loss_forward.1} parent=5 // pred_check
        %p182 = pneg %p181
      $region18: #{get_loss_forward.1} parent=5 // pred_check_branch
        %184 = sbr.rel (%p182) target = $region20
      $region19: #{get_loss_forward.1} parent=5 // pred_region
        // Predicated region
        $region21: #{get_loss_forward.1} parent=19 // pred_check
          %p185 = pneg %p52
        $region22: #{get_loss_forward.1} parent=19 // pred_check_branch
          %187 = sbr.rel (%p185) target = $region24
        $region23: #{get_loss_forward.1} parent=19 // pred_region
          %s188 = sand.u32 %s42, 1
          %s189 = scalar_lea.sflag [#allocation5], %s188
          %s190 = sand.u32 %s42, 1
          %s191 = smul.addr %s190, 56
          %s192 = scalar_lea.vmem [#allocation4], %s191
          %s193 = sadd.s32 %s21, %s22
          %p194 = scmp.lt.s32.totalorder %s193, 1
          %s195 = scalar_select %p194, %s193, 1
          %s196 = smul.u32 7, %s195
          %s197 = ssub.s32 8, %s196
          %p198 = scmp.lt.s32.totalorder %s197, 7
          %s199 = scalar_select %p198, %s197, 7
          %s200 = smul.u32 8, %s199
          %s201 = ssub.s32 56, %s200
          %s202 = sshll.u32 %s201, 4
          %203 = vsyncadd %s189, %s202
          %p204 = scmp.ne.s32.totalorder 0, %s200
          %s205 = smul.addr %s196, 8
          %s206 = scalar_lea.hbm %s0, %s205
          %s207 = smul.u32 %s199, 8
          %s208 = sshll.u32 %s207, 4
          %s209 = sshll.u32 %s206, 4
          %s210 = int_to_ptr.hbm [resolvable:$true] %s209
          %s211 = sshll.u32 %s192, 4
          %s212 = int_to_ptr.vmem [resolvable:$true] %s211
          %214 = dma.hbm_to_vmem [thread:$0]  (%p204), %s210, %s208, %s212, %s189
        $region24: #{get_loss_forward.1} parent=19 // pred_fallthru
          _
        // Predicated region
        $region25: #{get_loss_forward.1} parent=19 // pred_check
          %p215 = pneg %p84
        $region26: #{get_loss_forward.1} parent=19 // pred_check_branch
          %217 = sbr.rel (%p215) target = $region28
        $region27: #{get_loss_forward.1} parent=19 // pred_region
          %s218 = sadd.s32 %s21, %s22
          %p219 = scmp.lt.s32.totalorder %s218, 1
          %s220 = scalar_select %p219, %s218, 1
          %s221 = smul.u32 7, %s220
          %s222 = ssub.s32 8, %s221
          %p223 = scmp.lt.s32.totalorder %s222, 7
          %s224 = scalar_select %p223, %s222, 7
          %p225 = scmp.lt.s32.totalorder %s221, 7
          %s226 = scalar_select %p225, %s221, 7
          %s227 = scalar_lea.vmem %s1, %s226
          %s228 = sadd.s32 %s21, %s22
          %p229 = scmp.lt.s32.totalorder %s228, 1
          %s230 = scalar_select %p229, %s228, 1
          %s231 = smul.u32 7, %s230
          %s232 = ssub.s32 8, %s231
          %p233 = scmp.lt.s32.totalorder %s232, 7
          %s234 = scalar_select %p233, %s232, 7
        $region28: #{get_loss_forward.1} parent=19 // pred_fallthru
          _
      $region20: #{get_loss_forward.1} parent=5 // pred_fallthru
        _
      %p235 = scmp.le.s32.totalorder 1, %s14
      %p236 = scmp.lt.s32.totalorder %s14, 3
      %p237 = pnand %p235, %p236
      %p238 = pneg %p237
      // Predicated region
      $region29: #{get_loss_forward.1} parent=5 // pred_check
        _
      $region30: #{get_loss_forward.1} parent=5 // pred_check_branch
        %240 = sbr.rel (%p237) target = $region32
      $region31: #{get_loss_forward.1} parent=5 // pred_region
        %s241 = ssub.s32 %s14, 1
        %s242 = sand.u32 %s45, 1
        %s243 = scalar_lea.sflag [#allocation5], %s242
        %s244 = sand.u32 %s45, 1
        %s245 = smul.addr %s244, 56
        %s246 = scalar_lea.vmem [#allocation4], %s245
        // Predicated region
        $region33: #{get_loss_forward.1} parent=31 // pred_check
          %p247 = pneg %p58
        $region34: #{get_loss_forward.1} parent=31 // pred_check_branch
          %249 = sbr.rel (%p247) target = $region36
        $region35: #{get_loss_forward.1} parent=31 // pred_region
          %251 = dma.done %s243, 896
        $region36: #{get_loss_forward.1} parent=31 // pred_fallthru
          _
        %s252 = sand.u32 %s45, 1
        %s253 = scalar_lea.sflag [#allocation5], %s252
        %s254 = sand.u32 %s45, 1
        %s255 = smul.addr %s254, 56
        %s256 = scalar_lea.vmem [#allocation4], %s255
        %p257 = pneg %p58
        %p258 = pneg %p55
        %s259 = sadd.s32 %s23, %s24
        %p260 = scmp.lt.s32.totalorder %s259, 1
        %s261 = scalar_select %p260, %s259, 1
        %s262 = smul.u32 7, %s261
        %s263 = ssub.s32 8, %s262
        %p264 = scmp.lt.s32.totalorder %s263, 7
        %s265 = scalar_select %p264, %s263, 7
        %p266 = scmp.lt.s32.totalorder %s262, 7
        %s267 = scalar_select %p266, %s262, 7
        %s268 = scalar_lea.vmem %s1, %s267
        %p269 = pneg %p90
        %p270 = pneg %p87
        %p271 = pneg %p111
        %p272 = pneg %p108
        %p273 = pneg %p137
        %p274 = pneg %p134
        %p275 = scmp.lt.s32.totalorder %s23, 1
        %s276 = scalar_select %p275, %s23, 1
        %s277 = smul.addr %s276, 8
        %s278 = scalar_lea.vmem %s3, %s277
        %p279 = pneg %p163
        %p280 = pneg %p160
        %p281 = scmp.lt.s32.totalorder %s23, 1
        %s282 = scalar_select %p281, %s23, 1
        %s283 = smul.addr %s282, 8
        %s284 = scalar_lea.vmem %s4, %s283
        %s285 = sadd.s32 %s23, %s24
        %p286 = scmp.lt.s32.totalorder %s285, 1
        %s287 = scalar_select %p286, %s285, 1
        %s288 = smul.u32 7, %s287
        %s289 = ssub.s32 8, %s288
        %p290 = scmp.lt.s32.totalorder %s289, 7
        %s291 = scalar_select %p290, %s289, 7
        %s292 = smul.u32 8, %s291
        %s293 = sadd.s32 %s23, %s24
        %p294 = scmp.lt.s32.totalorder %s293, 1
        %s295 = scalar_select %p294, %s293, 1
        %s296 = smul.u32 7, %s295
        %s297 = ssub.s32 8, %s296
        %p298 = scmp.lt.s32.totalorder %s297, 7
        %s299 = scalar_select %p298, %s297, 7
        %p300 = scmp.lt.s32.totalorder %s296, 7
        %s301 = scalar_select %p300, %s296, 7
        %s302 = scalar_lea.vmem %s1, %s301
        %s303 = sadd.s32 %s23, %s24
        %p304 = scmp.lt.s32.totalorder %s303, 1
        %s305 = scalar_select %p304, %s303, 1
        %s306 = smul.u32 7, %s305
        %s307 = ssub.s32 8, %s306
        %p308 = scmp.lt.s32.totalorder %s307, 7
        %s309 = scalar_select %p308, %s307, 7
        %p310 = scmp.lt.s32.totalorder %s23, 1
        %s311 = scalar_select %p310, %s23, 1
        %s312 = smul.addr %s311, 8
        %s313 = scalar_lea.vmem %s3, %s312
        %p314 = scmp.lt.s32.totalorder %s23, 1
        %s315 = scalar_select %p314, %s23, 1
        %s316 = smul.addr %s315, 8
        %s317 = scalar_lea.vmem %s4, %s316
        %p318 = scmp.eq.s32.totalorder %s24, 0
        // Predicated region
        $region37: #{get_loss_forward.1} parent=31 // pred_check
          %p319 = pneg %p318
        $region38: #{get_loss_forward.1} parent=31 // pred_check_branch
          %321 = sbr.rel (%p319) target = $region40
        $region39: #{get_loss_forward.1} parent=31 // pred_region
          %v322 = vlaneseq
          %vm323 = vcmp.ge.s32.totalorder %v322, 0
          %vm324 = vcmp.lt.s32.totalorder %v322, 896
          %vm325 = vmand %vm323, %vm324
          %326 = vst.msk [vmem:[#allocation2] sm:$0x7f] %vm325, 0.0
          %327 = vst.msk [vmem:[#allocation3] sm:$0x7f] %vm325, 0.0
        $region40: #{get_loss_forward.1} parent=31 // pred_fallthru
          _
        %v328 = vld [vmem:[%s246] sm:$0x1f]
        %v329 = vld [vmem:[%s246 + $0x8] sm:$0x1f]
        %v330 = vld [vmem:[%s246 + $0x10] sm:$0x1f]
        %v331 = vld [vmem:[%s246 + $0x18] sm:$0x1f]
        %v332 = vld [vmem:[%s246 + $0x20] sm:$0x1f]
        %v333 = vld [vmem:[%s246 + $0x28] sm:$0x1f]
        %v334 = vld [vmem:[%s246 + $0x30] sm:$0x1f]
        %v335 = vld [vmem:[%s302] sm:$0xff]
        %v336 = vld [vmem:[%s2] sm:$0x1f]
        %s337 = sadd.s32 %s23, %s24
        %s338 = smul.u32 %s337, 896
        %v339 = vlaneseq
        %v340 = vand.u32 %v339, 127
        %v341 = vadd.s32 %v340, 128
        %v342 = vadd.s32 %v340, 256
        %v343 = vadd.s32 %v340, 384
        %v344 = vadd.s32 %v340, 512
        %v345 = vadd.s32 %v340, 640
        %v346 = vadd.s32 %v340, 768
        %v347 = vstv %s338
        %v348 = vadd.s32 %v347, %v340
        %v349 = vadd.s32 %v347, %v341
        %v350 = vadd.s32 %v347, %v342
        %v351 = vadd.s32 %v347, %v343
        %v352 = vadd.s32 %v347, %v344
        %v353 = vadd.s32 %v347, %v345
        %v354 = vadd.s32 %v347, %v346
        %vm355 = vcmp.lt.s32.totalorder %v348, 1000
        %vm356 = vcmp.lt.s32.totalorder %v349, 1000
        %vm357 = vcmp.lt.s32.totalorder %v350, 1000
        %vm358 = vcmp.lt.s32.totalorder %v351, 1000
        %vm359 = vcmp.lt.s32.totalorder %v352, 1000
        %vm360 = vcmp.lt.s32.totalorder %v353, 1000
        %vm361 = vcmp.lt.s32.totalorder %v354, 1000
        %v362 = vlaneseq
        %v363 = vshrl.u32 %v362, 7
        %v364 = vperm.slane %v335, 0
        %v365 = vperm.slane %v335, 1
        %v366 = vperm.slane %v335, 2
        %v367 = vperm.slane %v335, 3
        %v368 = vperm.slane %v335, 4
        %v369 = vperm.slane %v335, 5
        %v370 = vperm.slane %v335, 6
        %vm371 = vcmp.eq.s32.totalorder %v363, %v364
        %vm372 = vcmp.eq.s32.totalorder %v363, %v365
        %vm373 = vcmp.eq.s32.totalorder %v363, %v366
        %vm374 = vcmp.eq.s32.totalorder %v363, %v367
        %vm375 = vcmp.eq.s32.totalorder %v363, %v368
        %vm376 = vcmp.eq.s32.totalorder %v363, %v369
        %vm377 = vcmp.eq.s32.totalorder %v363, %v370
        %v378 = vsel %vm371, 1, 0
        %v379 = vsel %vm372, 1, 0
        %v380 = vsel %vm373, 1, 0
        %v381 = vsel %vm374, 1, 0
        %v382 = vsel %vm375, 1, 0
        %v383 = vsel %vm376, 1, 0
        %v384 = vsel %vm377, 1, 0
        %v385 = vcvt.s32.f32 %v378
        %v386 = vcvt.s32.f32 %v379
        %v387 = vcvt.s32.f32 %v380
        %v388 = vcvt.s32.f32 %v381
        %v389 = vcvt.s32.f32 %v382
        %v390 = vcvt.s32.f32 %v383
        %v391 = vcvt.s32.f32 %v384
        %vm392 = vcmask 1044480
        %v393 = vsel %vm392, %v328, -inf
        %v394 = vrot.slane %v393, 4
        %v395 = vmax.f32 %v393, %v394
        %v396 = vrot.slane %v395, 2
        %v397 = vmax.f32 %v395, %v396
        %v398 = vrot.slane %v397, 1
        %v399 = vmax.f32 %v397, %v398
        %v400 = vsel %vm392, %v329, -inf
        %v401 = vrot.slane %v400, 4
        %v402 = vmax.f32 %v400, %v401
        %v403 = vrot.slane %v402, 2
        %v404 = vmax.f32 %v402, %v403
        %v405 = vrot.slane %v404, 1
        %v406 = vmax.f32 %v404, %v405
        %v407 = vsel %vm392, %v330, -inf
        %v408 = vrot.slane %v407, 4
        %v409 = vmax.f32 %v407, %v408
        %v410 = vrot.slane %v409, 2
        %v411 = vmax.f32 %v409, %v410
        %v412 = vrot.slane %v411, 1
        %v413 = vmax.f32 %v411, %v412
        %v414 = vsel %vm392, %v331, -inf
        %v415 = vrot.slane %v414, 4
        %v416 = vmax.f32 %v414, %v415
        %v417 = vrot.slane %v416, 2
        %v418 = vmax.f32 %v416, %v417
        %v419 = vrot.slane %v418, 1
        %v420 = vmax.f32 %v418, %v419
        %v421 = vsel %vm392, %v332, -inf
        %v422 = vrot.slane %v421, 4
        %v423 = vmax.f32 %v421, %v422
        %v424 = vrot.slane %v423, 2
        %v425 = vmax.f32 %v423, %v424
        %v426 = vrot.slane %v425, 1
        %v427 = vmax.f32 %v425, %v426
        %v428 = vsel %vm392, %v333, -inf
        %v429 = vrot.slane %v428, 4
        %v430 = vmax.f32 %v428, %v429
        %v431 = vrot.slane %v430, 2
        %v432 = vmax.f32 %v430, %v431
        %v433 = vrot.slane %v432, 1
        %v434 = vmax.f32 %v432, %v433
        %v435 = vsel %vm392, %v334, -inf
        %v436 = vrot.slane %v435, 4
        %v437 = vmax.f32 %v435, %v436
        %v438 = vrot.slane %v437, 2
        %v439 = vmax.f32 %v437, %v438
        %v440 = vrot.slane %v439, 1
        %v441 = vmax.f32 %v439, %v440
        %v442 = vsub.f32 %v328, %v399
        %v443 = vsub.f32 %v329, %v406
        %v444 = vsub.f32 %v330, %v413
        %v445 = vsub.f32 %v331, %v420
        %v446 = vsub.f32 %v332, %v427
        %v447 = vsub.f32 %v333, %v434
        %v448 = vsub.f32 %v334, %v441
        %v449 = vmul.f32 %v442, 1.442695
        %v450 = vpow.pop %v449
        %v451 = vmul.f32 %v443, 1.442695
        %v452 = vpow.pop %v451
        %v453 = vmul.f32 %v444, 1.442695
        %v454 = vpow.pop %v453
        %v455 = vmul.f32 %v445, 1.442695
        %v456 = vpow.pop %v455
        %v457 = vmul.f32 %v446, 1.442695
        %v458 = vpow.pop %v457
        %v459 = vmul.f32 %v447, 1.442695
        %v460 = vpow.pop %v459
        %v461 = vmul.f32 %v448, 1.442695
        %v462 = vpow.pop %v461
        %v463 = vsel %vm392, %v450, 0.0
        %v464 = vrot.slane %v463, 4
        %v465 = vadd.f32 %v463, %v464
        %v466 = vrot.slane %v465, 2
        %v467 = vadd.f32 %v465, %v466
        %v468 = vrot.slane %v467, 1
        %v469 = vadd.f32 %v467, %v468
        %v470 = vsel %vm392, %v452, 0.0
        %v471 = vrot.slane %v470, 4
        %v472 = vadd.f32 %v470, %v471
        %v473 = vrot.slane %v472, 2
        %v474 = vadd.f32 %v472, %v473
        %v475 = vrot.slane %v474, 1
        %v476 = vadd.f32 %v474, %v475
        %v477 = vsel %vm392, %v454, 0.0
        %v478 = vrot.slane %v477, 4
        %v479 = vadd.f32 %v477, %v478
        %v480 = vrot.slane %v479, 2
        %v481 = vadd.f32 %v479, %v480
        %v482 = vrot.slane %v481, 1
        %v483 = vadd.f32 %v481, %v482
        %v484 = vsel %vm392, %v456, 0.0
        %v485 = vrot.slane %v484, 4
        %v486 = vadd.f32 %v484, %v485
        %v487 = vrot.slane %v486, 2
        %v488 = vadd.f32 %v486, %v487
        %v489 = vrot.slane %v488, 1
        %v490 = vadd.f32 %v488, %v489
        %v491 = vsel %vm392, %v458, 0.0
        %v492 = vrot.slane %v491, 4
        %v493 = vadd.f32 %v491, %v492
        %v494 = vrot.slane %v493, 2
        %v495 = vadd.f32 %v493, %v494
        %v496 = vrot.slane %v495, 1
        %v497 = vadd.f32 %v495, %v496
        %v498 = vsel %vm392, %v460, 0.0
        %v499 = vrot.slane %v498, 4
        %v500 = vadd.f32 %v498, %v499
        %v501 = vrot.slane %v500, 2
        %v502 = vadd.f32 %v500, %v501
        %v503 = vrot.slane %v502, 1
        %v504 = vadd.f32 %v502, %v503
        %v505 = vsel %vm392, %v462, 0.0
        %v506 = vrot.slane %v505, 4
        %v507 = vadd.f32 %v505, %v506
        %v508 = vrot.slane %v507, 2
        %v509 = vadd.f32 %v507, %v508
        %v510 = vrot.slane %v509, 1
        %v511 = vadd.f32 %v509, %v510
        %v512 = vlog2.pop %v469
        %v513 = vmul.f32 %v512, 0.6931472
        %v514 = vlog2.pop %v476
        %v515 = vmul.f32 %v514, 0.6931472
        %v516 = vlog2.pop %v483
        %v517 = vmul.f32 %v516, 0.6931472
        %v518 = vlog2.pop %v490
        %v519 = vmul.f32 %v518, 0.6931472
        %v520 = vlog2.pop %v497
        %v521 = vmul.f32 %v520, 0.6931472
        %v522 = vlog2.pop %v504
        %v523 = vmul.f32 %v522, 0.6931472
        %v524 = vlog2.pop %v511
        %v525 = vmul.f32 %v524, 0.6931472
        %v526 = vadd.f32 %v513, %v399
        %v527 = vadd.f32 %v515, %v406
        %v528 = vadd.f32 %v517, %v413
        %v529 = vadd.f32 %v519, %v420
        %v530 = vadd.f32 %v521, %v427
        %v531 = vadd.f32 %v523, %v434
        %v532 = vadd.f32 %v525, %v441
        %v533 = vmul.f32 %v385, %v328
        %v534 = vmul.f32 %v386, %v329
        %v535 = vmul.f32 %v387, %v330
        %v536 = vmul.f32 %v388, %v331
        %v537 = vmul.f32 %v389, %v332
        %v538 = vmul.f32 %v390, %v333
        %v539 = vmul.f32 %v391, %v334
        %v540 = vsel %vm392, %v533, 0.0
        %v541 = vrot.slane %v540, 4
        %v542 = vadd.f32 %v540, %v541
        %v543 = vrot.slane %v542, 2
        %v544 = vadd.f32 %v542, %v543
        %v545 = vrot.slane %v544, 1
        %v546 = vadd.f32 %v544, %v545
        %v547 = vsel %vm392, %v534, 0.0
        %v548 = vrot.slane %v547, 4
        %v549 = vadd.f32 %v547, %v548
        %v550 = vrot.slane %v549, 2
        %v551 = vadd.f32 %v549, %v550
        %v552 = vrot.slane %v551, 1
        %v553 = vadd.f32 %v551, %v552
        %v554 = vsel %vm392, %v535, 0.0
        %v555 = vrot.slane %v554, 4
        %v556 = vadd.f32 %v554, %v555
        %v557 = vrot.slane %v556, 2
        %v558 = vadd.f32 %v556, %v557
        %v559 = vrot.slane %v558, 1
        %v560 = vadd.f32 %v558, %v559
        %v561 = vsel %vm392, %v536, 0.0
        %v562 = vrot.slane %v561, 4
        %v563 = vadd.f32 %v561, %v562
        %v564 = vrot.slane %v563, 2
        %v565 = vadd.f32 %v563, %v564
        %v566 = vrot.slane %v565, 1
        %v567 = vadd.f32 %v565, %v566
        %v568 = vsel %vm392, %v537, 0.0
        %v569 = vrot.slane %v568, 4
        %v570 = vadd.f32 %v568, %v569
        %v571 = vrot.slane %v570, 2
        %v572 = vadd.f32 %v570, %v571
        %v573 = vrot.slane %v572, 1
        %v574 = vadd.f32 %v572, %v573
        %v575 = vsel %vm392, %v538, 0.0
        %v576 = vrot.slane %v575, 4
        %v577 = vadd.f32 %v575, %v576
        %v578 = vrot.slane %v577, 2
        %v579 = vadd.f32 %v577, %v578
        %v580 = vrot.slane %v579, 1
        %v581 = vadd.f32 %v579, %v580
        %v582 = vsel %vm392, %v539, 0.0
        %v583 = vrot.slane %v582, 4
        %v584 = vadd.f32 %v582, %v583
        %v585 = vrot.slane %v584, 2
        %v586 = vadd.f32 %v584, %v585
        %v587 = vrot.slane %v586, 1
        %v588 = vadd.f32 %v586, %v587
        %590 = vset.pattern.permute.xlu0 0
        %591 = vperm.xlu0 %590, %v336
        %v592 = vpop.permute.xlu0 %591
        %v594 = vmul.f32 %v385, %v592
        %v595 = vmul.f32 %v386, %v592
        %v596 = vmul.f32 %v387, %v592
        %v597 = vmul.f32 %v388, %v592
        %v598 = vmul.f32 %v389, %v592
        %v599 = vmul.f32 %v390, %v592
        %v600 = vmul.f32 %v391, %v592
        %v601 = vsel %vm392, %v594, 0.0
        %v602 = vrot.slane %v601, 4
        %v603 = vadd.f32 %v601, %v602
        %v604 = vrot.slane %v603, 2
        %v605 = vadd.f32 %v603, %v604
        %v606 = vrot.slane %v605, 1
        %v607 = vadd.f32 %v605, %v606
        %v608 = vsel %vm392, %v595, 0.0
        %v609 = vrot.slane %v608, 4
        %v610 = vadd.f32 %v608, %v609
        %v611 = vrot.slane %v610, 2
        %v612 = vadd.f32 %v610, %v611
        %v613 = vrot.slane %v612, 1
        %v614 = vadd.f32 %v612, %v613
        %v615 = vsel %vm392, %v596, 0.0
        %v616 = vrot.slane %v615, 4
        %v617 = vadd.f32 %v615, %v616
        %v618 = vrot.slane %v617, 2
        %v619 = vadd.f32 %v617, %v618
        %v620 = vrot.slane %v619, 1
        %v621 = vadd.f32 %v619, %v620
        %v622 = vsel %vm392, %v597, 0.0
        %v623 = vrot.slane %v622, 4
        %v624 = vadd.f32 %v622, %v623
        %v625 = vrot.slane %v624, 2
        %v626 = vadd.f32 %v624, %v625
        %v627 = vrot.slane %v626, 1
        %v628 = vadd.f32 %v626, %v627
        %v629 = vsel %vm392, %v598, 0.0
        %v630 = vrot.slane %v629, 4
        %v631 = vadd.f32 %v629, %v630
        %v632 = vrot.slane %v631, 2
        %v633 = vadd.f32 %v631, %v632
        %v634 = vrot.slane %v633, 1
        %v635 = vadd.f32 %v633, %v634
        %v636 = vsel %vm392, %v599, 0.0
        %v637 = vrot.slane %v636, 4
        %v638 = vadd.f32 %v636, %v637
        %v639 = vrot.slane %v638, 2
        %v640 = vadd.f32 %v638, %v639
        %v641 = vrot.slane %v640, 1
        %v642 = vadd.f32 %v640, %v641
        %v643 = vsel %vm392, %v600, 0.0
        %v644 = vrot.slane %v643, 4
        %v645 = vadd.f32 %v643, %v644
        %v646 = vrot.slane %v645, 2
        %v647 = vadd.f32 %v645, %v646
        %v648 = vrot.slane %v647, 1
        %v649 = vadd.f32 %v647, %v648
        %v650 = vld [vmem:[#allocation2] sm:$0xff]
        %v651 = vsub.f32 %v526, %v546
        %v652 = vsub.f32 %v527, %v553
        %v653 = vsub.f32 %v528, %v560
        %v654 = vsub.f32 %v529, %v567
        %v655 = vsub.f32 %v530, %v574
        %v656 = vsub.f32 %v531, %v581
        %v657 = vsub.f32 %v532, %v588
        %v658 = vmul.f32 %v607, %v651
        %v659 = vmul.f32 %v614, %v652
        %v660 = vmul.f32 %v621, %v653
        %v661 = vmul.f32 %v628, %v654
        %v662 = vmul.f32 %v635, %v655
        %v663 = vmul.f32 %v642, %v656
        %v664 = vmul.f32 %v649, %v657
        %v665 = vsel %vm355, %v658, 0.0
        %v666 = vsel %vm356, %v659, 0.0
        %v667 = vsel %vm357, %v660, 0.0
        %v668 = vsel %vm358, %v661, 0.0
        %v669 = vsel %vm359, %v662, 0.0
        %v670 = vsel %vm360, %v663, 0.0
        %v671 = vsel %vm361, %v664, 0.0
        %v679 = vrot.slane %v666, 7
        %v680 = vrot.slane %v667, 6
        %v681 = vrot.slane %v668, 5
        %v682 = vrot.slane %v669, 4
        %v683 = vrot.slane %v670, 3
        %v684 = vrot.slane %v671, 2
        %vm685 = vcmask 1040384
        %v686 = vsel %vm685, %v665, %v679
        %vm687 = vcmask 1042434
        %v688 = vsel %vm687, %v680, %v681
        %vm689 = vcmask 1041408
        %v690 = vsel %vm689, %v686, %v688
        %vm691 = vcmask 1044484
        %v692 = vsel %vm691, %v682, %v683
        %vm693 = vcmask 1045508
        %v694 = vsel %vm693, %v692, %v684
        %vm695 = vcmask 1043456
        %v696 = vsel %vm695, %v690, %v694
        %v698 = vadd.f32 %v650, %v696
        %v699 = vlaneseq
        %vm700 = vcmp.ge.s32.totalorder %v699, 0
        %vm701 = vcmp.lt.s32.totalorder %v699, 896
        %vm702 = vmand %vm700, %vm701
        %703 = vst.msk [vmem:[#allocation2] sm:$0x7f] %vm702, %v698
        %v704 = vld [vmem:[#allocation3] sm:$0xff]
        %v705 = vsel %vm355, %v607, 0.0
        %v706 = vsel %vm356, %v614, 0.0
        %v707 = vsel %vm357, %v621, 0.0
        %v708 = vsel %vm358, %v628, 0.0
        %v709 = vsel %vm359, %v635, 0.0
        %v710 = vsel %vm360, %v642, 0.0
        %v711 = vsel %vm361, %v649, 0.0
        %v719 = vrot.slane %v706, 7
        %v720 = vrot.slane %v707, 6
        %v721 = vrot.slane %v708, 5
        %v722 = vrot.slane %v709, 4
        %v723 = vrot.slane %v710, 3
        %v724 = vrot.slane %v711, 2
        %v725 = vsel %vm685, %v705, %v719
        %v726 = vsel %vm687, %v720, %v721
        %v727 = vsel %vm689, %v725, %v726
        %v728 = vsel %vm691, %v722, %v723
        %v729 = vsel %vm693, %v728, %v724
        %v730 = vsel %vm695, %v727, %v729
        %v732 = vadd.f32 %v704, %v730
        %733 = vst.msk [vmem:[#allocation3] sm:$0x7f] %vm702, %v732
        // Predicated region
        $region41: #{get_loss_forward.1} parent=31 // pred_check
          %p734 = pneg %p318
        $region42: #{get_loss_forward.1} parent=31 // pred_check_branch
          %736 = sbr.rel (%p734) target = $region44
        $region43: #{get_loss_forward.1} parent=31 // pred_region
          %v737 = vld [vmem:[#allocation2] sm:$0xff]
          %v739 = vperm.slane %v737, 0
          %v740 = vperm.slane %v737, 1
          %v741 = vperm.slane %v737, 2
          %v742 = vperm.slane %v737, 3
          %v743 = vperm.slane %v737, 4
          %v744 = vperm.slane %v737, 5
          %v745 = vperm.slane %v737, 6
          %v753 = vsel %vm685, %v739, 0.0
          %v754 = vsel %vm685, %v740, 0.0
          %v755 = vadd.f32 %v753, %v754
          %v756 = vsel %vm685, %v741, 0.0
          %v757 = vadd.f32 %v755, %v756
          %v758 = vsel %vm685, %v742, 0.0
          %v759 = vadd.f32 %v757, %v758
          %v760 = vsel %vm685, %v743, 0.0
          %v761 = vadd.f32 %v759, %v760
          %v762 = vsel %vm685, %v744, 0.0
          %v763 = vadd.f32 %v761, %v762
          %v764 = vsel %vm685, %v745, 0.0
          %v765 = vadd.f32 %v763, %v764
          %766 = vadd.xlane.f32.xlu0 %v765
          %v767 = vpop.xlane.xlu0 %766
          %v768 = vld [vmem:[#allocation3] sm:$0xff]
          %v770 = vperm.slane %v768, 0
          %v771 = vperm.slane %v768, 1
          %v772 = vperm.slane %v768, 2
          %v773 = vperm.slane %v768, 3
          %v774 = vperm.slane %v768, 4
          %v775 = vperm.slane %v768, 5
          %v776 = vperm.slane %v768, 6
          %v784 = vsel %vm685, %v770, 0.0
          %v785 = vsel %vm685, %v771, 0.0
          %v786 = vadd.f32 %v784, %v785
          %v787 = vsel %vm685, %v772, 0.0
          %v788 = vadd.f32 %v786, %v787
          %v789 = vsel %vm685, %v773, 0.0
          %v790 = vadd.f32 %v788, %v789
          %v791 = vsel %vm685, %v774, 0.0
          %v792 = vadd.f32 %v790, %v791
          %v793 = vsel %vm685, %v775, 0.0
          %v794 = vadd.f32 %v792, %v793
          %v795 = vsel %vm685, %v776, 0.0
          %v796 = vadd.f32 %v794, %v795
          %797 = vadd.xlane.f32.xlu0 %v796
          %v798 = vpop.xlane.xlu0 %797
          %v799 = vperm.slane %v767, 0
          %800 = vst [vmem:[%s313] sm:$0xff] %v799
          %v801 = vperm.slane %v798, 0
          %802 = vst [vmem:[%s317] sm:$0xff] %v801
        $region44: #{get_loss_forward.1} parent=31 // pred_fallthru
          _
        %p803 = scmp.lt.s32.totalorder %s23, 1
        %s804 = scalar_select %p803, %s23, 1
        %s805 = smul.addr %s804, 8
        %s806 = scalar_lea.vmem %s3, %s805
        %p807 = scmp.lt.s32.totalorder %s23, 1
        %s808 = scalar_select %p807, %s23, 1
        %s809 = smul.addr %s808, 8
        %s810 = scalar_lea.vmem %s4, %s809
        // Predicated region
        $region45: #{get_loss_forward.1} parent=31 // pred_check
          %p811 = pneg %p134
        $region46: #{get_loss_forward.1} parent=31 // pred_check_branch
          %813 = sbr.rel (%p811) target = $region48
        $region47: #{get_loss_forward.1} parent=31 // pred_region
          _
        $region48: #{get_loss_forward.1} parent=31 // pred_fallthru
          _
        // Predicated region
        $region49: #{get_loss_forward.1} parent=31 // pred_check
          %p814 = pneg %p160
        $region50: #{get_loss_forward.1} parent=31 // pred_check_branch
          %816 = sbr.rel (%p814) target = $region52
        $region51: #{get_loss_forward.1} parent=31 // pred_region
          _
        $region52: #{get_loss_forward.1} parent=31 // pred_fallthru
          _
      $region32: #{get_loss_forward.1} parent=5 // pred_fallthru
        _
      %p817 = scmp.le.s32.totalorder 2, %s14
      // Predicated region
      $region53: #{get_loss_forward.1} parent=5 // pred_check
        %p818 = pneg %p817
      $region54: #{get_loss_forward.1} parent=5 // pred_check_branch
        %820 = sbr.rel (%p818) target = $region56
      $region55: #{get_loss_forward.1} parent=5 // pred_region
        %s821 = ssub.s32 %s14, 2
        // Predicated region
        $region57: #{get_loss_forward.1} parent=55 // pred_check
          %p822 = pneg %p140
        $region58: #{get_loss_forward.1} parent=55 // pred_check_branch
          %824 = sbr.rel (%p822) target = $region60
        $region59: #{get_loss_forward.1} parent=55 // pred_region
          %p825 = scmp.lt.s32.totalorder %s25, 1
          %s826 = scalar_select %p825, %s25, 1
          %s827 = smul.addr %s826, 8
          %s828 = scalar_lea.vmem %s3, %s827
        $region60: #{get_loss_forward.1} parent=55 // pred_fallthru
          _
        // Predicated region
        $region61: #{get_loss_forward.1} parent=55 // pred_check
          %p829 = pneg %p166
        $region62: #{get_loss_forward.1} parent=55 // pred_check_branch
          %831 = sbr.rel (%p829) target = $region64
        $region63: #{get_loss_forward.1} parent=55 // pred_region
          %p832 = scmp.lt.s32.totalorder %s25, 1
          %s833 = scalar_select %p832, %s25, 1
          %s834 = smul.addr %s833, 8
          %s835 = scalar_lea.vmem %s4, %s834
        $region64: #{get_loss_forward.1} parent=55 // pred_fallthru
          _
      $region56: #{get_loss_forward.1} parent=5 // pred_fallthru
        _
    $region6: #{get_loss_forward.1} parent=1 // loop_footer
      %s18 = sadd.s32 1, %s14
    $region7: #{get_loss_forward.1} parent=1 // loop_footer_branch
      %13 = sbr.rel target = $region3
    $region8: #{get_loss_forward.1} parent=1 // loop_exit
      _
    %836 = vsyncpa [#allocation5], 1
    %s837 = scalar_lea.sflag [#allocation5], 1
    %838 = vsyncpa %s837, 1

</llo_original>
